<compile_context>
chip_gen: v7x
topology: tpu7x:2x2x1
jax: 0.10.0
libtpu: 0.0.40
codegen_flags: <defaults>
</compile_context>

<pallas_src>
import math
import functools

import jax
import jax.numpy as jnp
from jax import lax
from jax.experimental import pallas as pl
from jax.experimental.pallas import tpu as pltpu


def _round_up(x, m):
    return (x + m - 1) // m * m


def _token_embed_kernel(ids_ref, word_ref, pos_ref, out_ref, *,
                        scale, tt, t_pad, sub):
    """One grid step handles `tt` flattened rows (= tt // t_pad padded sequences).

    ids_ref : SMEM (N_pad,) int32     flat token ids (scalar-prefetched)
    word_ref: VMEM (V, D_pad)         whole word-embedding table (resident)
    pos_ref : VMEM (t_pad, D_pad)     positional slab for one padded sequence
    out_ref : VMEM (tt, D_pad)        dense output slab for this block
    """
    base = pl.program_id(0) * tt
    n_groups = tt // sub

    def group(g, carry):
        i0 = pl.multiple_of(g * sub, sub)               # row offset in block
        p0 = pl.multiple_of(lax.rem(i0, t_pad), sub)    # position offset
        # Gather `sub` word rows (dynamic single-row loads), assemble in
        # vregs, then scale + positional add vectorized, and store one dense,
        # aligned (sub, D_pad) group — no masked per-row stores.
        rows = [word_ref[pl.ds(ids_ref[base + i0 + j], 1), :].astype(jnp.float32)
                for j in range(sub)]
        w = jnp.concatenate(rows, axis=0)               # (sub, D_pad) f32
        pe = pos_ref[pl.ds(p0, sub), :].astype(jnp.float32)
        out_ref[pl.ds(i0, sub), :] = (pe + w * scale).astype(out_ref.dtype)
        return carry

    lax.fori_loop(0, n_groups, group, 0)


def token_embedding(x, word_embed_weight, pos_embed_weight, scale):
    """Equivalent of TokenEmbedding.forward (eval-mode dropout == identity)."""
    B, T = x.shape
    V, D = word_embed_weight.shape
    max_len, D2 = pos_embed_weight.shape
    assert D == D2
    if T > max_len:
        raise RuntimeError('Sequence length exceeds the maximum allowed limit')

    out_dtype = jnp.result_type(word_embed_weight.dtype, pos_embed_weight.dtype)
    scale_val = float(math.sqrt(float(scale)))

    # ---- layout / tiling decisions -----------------------------------------
    out_itemsize = jnp.dtype(out_dtype).itemsize
    sub = max(8, 32 // out_itemsize)          # sublane tile rows for out dtype
    D_pad = _round_up(D, 128)                 # lane-dense rows
    T_pad = _round_up(T, sub)                 # sequence padded to sublane tile

    # Rows per grid step: large enough to amortize the ~0.35 us step overhead,
    # small enough that the double-buffered output slab stays a few MiB.
    max_rows_vmem = max(sub, ((4 << 20) // (D_pad * out_itemsize)) // sub * sub)
    target_rows = min(1024, max_rows_vmem)
    rows_per_block = max(1, min(B, target_rows // T_pad))
    TT = rows_per_block * T_pad               # tokens per grid step
    B_pad = _round_up(B, rows_per_block)
    num_blocks = B_pad // rows_per_block
    N_pad = B_pad * T_pad

    if N_pad > (1 << 17):
        # TODO(synk): chunk the batch (or move ids to a per-block VMEM input)
        # when B*T grows past what comfortably fits SMEM.
        raise NotImplementedError('token count too large for SMEM-resident ids')

    # Lane-dense tables.  (Pre-pad once outside the hot path in production;
    # the pad is skipped entirely in the common D % 128 == 0 case.)
    if D_pad != D:
        word_tbl = jnp.pad(word_embed_weight, ((0, 0), (0, D_pad - D)))
    else:
        word_tbl = word_embed_weight
    pos_slab = pos_embed_weight[:T]
    if T_pad != T or D_pad != D:
        pos_slab = jnp.pad(pos_slab, ((0, T_pad - T), (0, D_pad - D)))

    # Flat, clamped token ids (1-D avoids 2-D SMEM padding waste).  NOTE:
    # clipping silently remaps out-of-range ids instead of failing like
    # F.embedding would.
    ids2d = jnp.clip(x.astype(jnp.int32), 0, V - 1)
    if B_pad != B or T_pad != T:
        ids2d = jnp.pad(ids2d, ((0, B_pad - B), (0, T_pad - T)))
    ids = ids2d.reshape(-1)

    # ---- VMEM budget (generation-aware) ------------------------------------
    # Pallas allocates 2 buffers per operand by default, even for the pinned
    # (index_map == (0, 0)) resident tables, so the table terms count twice.
    word_itemsize = jnp.dtype(word_tbl.dtype).itemsize
    pos_itemsize = jnp.dtype(pos_slab.dtype).itemsize
    vmem_needed = (2 * V * D_pad * word_itemsize
                   + 2 * T_pad * D_pad * pos_itemsize
                   + 2 * TT * D_pad * out_itemsize
                   + (1 << 20))
    try:
        vmem_cap = int(pltpu.get_tpu_info().vmem_capacity_bytes)
    except Exception:
        vmem_cap = 64 * 1024 * 1024           # conservative (v7x per-TC)
    resident_cap = min(40 << 20, (2 * vmem_cap) // 5)   # ~40 MiB v5e/v6e, ~25 MiB v7x
    if vmem_needed > resident_cap:
        # TODO(synk): large-vocab path (manual double-buffered HBM row gather
        # with pltpu.make_async_copy) is not implemented; resident-table only.
        raise NotImplementedError(
            'word/pos tables too large for the resident-table fast path')
    vmem_limit = int(min(vmem_cap, max(vmem_needed + (4 << 20), 32 << 20)))

    kernel = functools.partial(_token_embed_kernel, scale=scale_val,
                               tt=TT, t_pad=T_pad, sub=sub)

    grid_spec = pltpu.PrefetchScalarGridSpec(
        num_scalar_prefetch=1,                # flat ids land in SMEM
        grid=(num_blocks,),
        in_specs=[
            # whole word-embedding table, resident in VMEM across the grid
            pl.BlockSpec((V, D_pad), lambda i, ids_sm: (0, 0)),
            # positional slab for one padded sequence, resident in VMEM
            pl.BlockSpec((T_pad, D_pad), lambda i, ids_sm: (0, 0)),
        ],
        out_specs=pl.BlockSpec((TT, D_pad), lambda i, ids_sm: (i, 0)),
    )

    out_flat = pl.pallas_call(
        kernel,
        grid_spec=grid_spec,
        out_shape=jax.ShapeDtypeStruct((N_pad, D_pad), out_dtype),
        compiler_params=pltpu.CompilerParams(
            dimension_semantics=("parallel",),
            vmem_limit_bytes=vmem_limit),
    )(ids, word_tbl, pos_slab)

    out = out_flat.reshape(B_pad, T_pad, D_pad)[:B, :T, :D]
    # TODO(synk): nn.Dropout is stochastic at train time; here it is the
    # inference-mode identity (could be added with pltpu.prng_random_bits).
    return out


if __name__ == "__main__":
    # Small deterministic shapes consistent with the module's forward pass.
    B, T = 2, 8          # batch, sequence length
    V, D = 50, 32        # vocab size, embedding dim
    MAX_LEN = 16         # positional table length
    SCALE = float(D)     # the module stores sqrt(scale)

    key = jax.random.PRNGKey(0)
    k_w, k_p, k_x = jax.random.split(key, 3)

    word_w = jax.random.normal(k_w, (V, D), dtype=jnp.float32)
    pos_w = jax.random.normal(k_p, (MAX_LEN, D), dtype=jnp.float32)
    x = jax.random.randint(k_x, (B, T), 0, V, dtype=jnp.int32)

    out = jax.block_until_ready(token_embedding(x, word_w, pos_w, SCALE))

    # Pure-JAX reference (eval-mode dropout == identity).
    ref = pos_w[jnp.arange(T)][None, :, :] + word_w[x] * jnp.sqrt(
        jnp.float32(SCALE))
    assert out.shape == (B, T, D)
    assert jnp.allclose(out, ref, atol=1e-5, rtol=1e-5)

    print("KERNEL_OK")
</pallas_src>

<mosaic_0001>
module attributes {stable_mosaic.version = 11 : i64} {
  func.func @_token_embed_kernel(%arg0: i32, %arg1: memref<16xi32, #tpu.memory_space<smem>>, %arg2: memref<50x128xf32, #tpu.memory_space<vmem>>, %arg3: memref<8x128xf32, #tpu.memory_space<vmem>>, %arg4: memref<16x128xf32, #tpu.memory_space<vmem>>) attributes {dimension_semantics = [#tpu.dimension_semantics<parallel>], iteration_bounds = array<i64: 1>, scalar_prefetch = 1 : i64, scratch_operands = 0 : i64, tpu.core_type = #tpu.core_type<tc>, window_params = [{pipeline_mode = #tpu.pipeline_mode<synchronous>, transform_indices = @transform_0, window_bounds = array<i64: 50, 128>}, {pipeline_mode = #tpu.pipeline_mode<synchronous>, transform_indices = @transform_1, window_bounds = array<i64: 8, 128>}, {transform_indices = @transform_2, window_bounds = array<i64: 16, 128>}]} {
    %c16_i32 = arith.constant 16 : i32
    %0 = arith.muli %arg0, %c16_i32 : i32
    %c0_i32 = arith.constant 0 : i32
    %c2_i32 = arith.constant 2 : i32
    %1 = arith.addi %c0_i32, %c2_i32 : i32
    %c1_i32 = arith.constant 1 : i32
    scf.for %arg5 = %c0_i32 to %1 step %c1_i32  : i32 {
      %c8_i32 = arith.constant 8 : i32
      %2 = arith.muli %arg5, %c8_i32 : i32
      %3 = tpu.assume_multiple %2, 8 : i32
      %c8_i32_1 = arith.constant 8 : i32
      %4 = arith.remsi %3, %c8_i32_1 : i32
      %5 = tpu.assume_multiple %4, 8 : i32
      %6 = arith.addi %0, %3 : i32
      %c0_i32_2 = arith.constant 0 : i32
      %7 = arith.addi %6, %c0_i32_2 : i32
      %8 = arith.index_cast %7 : i32 to index
      %9 = memref.load %arg1[%8] : memref<16xi32, #tpu.memory_space<smem>>
      %10 = arith.index_cast %9 : i32 to index
      %c0 = arith.constant 0 : index
      %11 = vector.load %arg2[%10, %c0] : memref<50x128xf32, #tpu.memory_space<vmem>>, vector<1x128xf32>
      %12 = arith.addi %0, %3 : i32
      %c1_i32_3 = arith.constant 1 : i32
      %13 = arith.addi %12, %c1_i32_3 : i32
      %14 = arith.index_cast %13 : i32 to index
      %15 = memref.load %arg1[%14] : memref<16xi32, #tpu.memory_space<smem>>
      %16 = arith.index_cast %15 : i32 to index
      %c0_4 = arith.constant 0 : index
      %17 = vector.load %arg2[%16, %c0_4] : memref<50x128xf32, #tpu.memory_space<vmem>>, vector<1x128xf32>
      %18 = arith.addi %0, %3 : i32
      %c2_i32_5 = arith.constant 2 : i32
      %19 = arith.addi %18, %c2_i32_5 : i32
      %20 = arith.index_cast %19 : i32 to index
      %21 = memref.load %arg1[%20] : memref<16xi32, #tpu.memory_space<smem>>
      %22 = arith.index_cast %21 : i32 to index
      %c0_6 = arith.constant 0 : index
      %23 = vector.load %arg2[%22, %c0_6] : memref<50x128xf32, #tpu.memory_space<vmem>>, vector<1x128xf32>
      %24 = arith.addi %0, %3 : i32
      %c3_i32 = arith.constant 3 : i32
      %25 = arith.addi %24, %c3_i32 : i32
      %26 = arith.index_cast %25 : i32 to index
      %27 = memref.load %arg1[%26] : memref<16xi32, #tpu.memory_space<smem>>
      %28 = arith.index_cast %27 : i32 to index
      %c0_7 = arith.constant 0 : index
      %29 = vector.load %arg2[%28, %c0_7] : memref<50x128xf32, #tpu.memory_space<vmem>>, vector<1x128xf32>
      %30 = arith.addi %0, %3 : i32
      %c4_i32 = arith.constant 4 : i32
      %31 = arith.addi %30, %c4_i32 : i32
      %32 = arith.index_cast %31 : i32 to index
      %33 = memref.load %arg1[%32] : memref<16xi32, #tpu.memory_space<smem>>
      %34 = arith.index_cast %33 : i32 to index
      %c0_8 = arith.constant 0 : index
      %35 = vector.load %arg2[%34, %c0_8] : memref<50x128xf32, #tpu.memory_space<vmem>>, vector<1x128xf32>
      %36 = arith.addi %0, %3 : i32
      %c5_i32 = arith.constant 5 : i32
      %37 = arith.addi %36, %c5_i32 : i32
      %38 = arith.index_cast %37 : i32 to index
      %39 = memref.load %arg1[%38] : memref<16xi32, #tpu.memory_space<smem>>
      %40 = arith.index_cast %39 : i32 to index
      %c0_9 = arith.constant 0 : index
      %41 = vector.load %arg2[%40, %c0_9] : memref<50x128xf32, #tpu.memory_space<vmem>>, vector<1x128xf32>
      %42 = arith.addi %0, %3 : i32
      %c6_i32 = arith.constant 6 : i32
      %43 = arith.addi %42, %c6_i32 : i32
      %44 = arith.index_cast %43 : i32 to index
      %45 = memref.load %arg1[%44] : memref<16xi32, #tpu.memory_space<smem>>
      %46 = arith.index_cast %45 : i32 to index
      %c0_10 = arith.constant 0 : index
      %47 = vector.load %arg2[%46, %c0_10] : memref<50x128xf32, #tpu.memory_space<vmem>>, vector<1x128xf32>
      %48 = arith.addi %0, %3 : i32
      %c7_i32 = arith.constant 7 : i32
      %49 = arith.addi %48, %c7_i32 : i32
      %50 = arith.index_cast %49 : i32 to index
      %51 = memref.load %arg1[%50] : memref<16xi32, #tpu.memory_space<smem>>
      %52 = arith.index_cast %51 : i32 to index
      %c0_11 = arith.constant 0 : index
      %53 = vector.load %arg2[%52, %c0_11] : memref<50x128xf32, #tpu.memory_space<vmem>>, vector<1x128xf32>
      %54 = tpu.concatenate %11, %17, %23, %29, %35, %41, %47, %53 in 0 : vector<1x128xf32>, vector<1x128xf32>, vector<1x128xf32>, vector<1x128xf32>, vector<1x128xf32>, vector<1x128xf32>, vector<1x128xf32>, vector<1x128xf32> -> vector<8x128xf32>
      %55 = arith.index_cast %5 : i32 to index
      %c0_12 = arith.constant 0 : index
      %56 = vector.load %arg3[%55, %c0_12] : memref<8x128xf32, #tpu.memory_space<vmem>>, vector<8x128xf32>
      %cst = arith.constant 5.65685415 : f32
      %57 = vector.broadcast %cst : f32 to vector<8x128xf32>
      %58 = arith.mulf %54, %57 : vector<8x128xf32>
      %59 = arith.addf %56, %58 : vector<8x128xf32>
      %60 = arith.index_cast %3 : i32 to index
      %c0_13 = arith.constant 0 : index
      %61 = vector.load %arg4[%60, %c0_13] : memref<16x128xf32, #tpu.memory_space<vmem>>, vector<8x128xf32>
      tpu.vector_store %arg4[%60, %c0_13], %59 {strides = array<i32>} : memref<16x128xf32, #tpu.memory_space<vmem>>, vector<8x128xf32>,
    }
    %c2_i32_0 = arith.constant 2 : i32
    return
  }
  func.func @transform_0(%arg0: i32, %arg1: memref<16xi32, #tpu.memory_space<smem>>) -> (i32, i32) {
    %c0_i32 = arith.constant 0 : i32
    %c0_i32_0 = arith.constant 0 : i32
    %c0_i32_1 = arith.constant 0 : i32
    return %c0_i32, %c0_i32_0 : i32, i32
  }
  func.func @transform_1(%arg0: i32, %arg1: memref<16xi32, #tpu.memory_space<smem>>) -> (i32, i32) {
    %c0_i32 = arith.constant 0 : i32
    %c0_i32_0 = arith.constant 0 : i32
    %c0_i32_1 = arith.constant 0 : i32
    return %c0_i32, %c0_i32_0 : i32, i32
  }
  func.func @transform_2(%arg0: i32, %arg1: memref<16xi32, #tpu.memory_space<smem>>) -> (i32, i32) {
    %c0_i32 = arith.constant 0 : i32
    %c0_i32_0 = arith.constant 0 : i32
    return %arg0, %c0_i32 : i32, i32
  }
}

</mosaic_0001>

<llo_original>
// kernel: tpu_custom_call.1
$region0: #{tpu_custom_call.1}
  #allocation0 [shape = 'u32[]', space=smem, size = 0x4, offset = 0x4, fixed_abs, tag = 'smem constant byte address 0x4 - core index']
  #allocation1 [shape = 'u32[144,128]{1,0:T(1,128)}', space=vmem, size = 0x12000, scoped, tag = 'internal scratch']
  #allocation2 [shape = 's32[1]{0}', space=sflag, size = 0x4, scoped, tag = 'scoped memory for tpu_custom_call.1']
  #allocation3 [shape = 'u8[512]{0}', space=smem, size = 0x200, scoped, tag = 'prefetched SMEM operand 0']
  %s0 = inlined_call_operand.hbm [shape: s32[16], index: 0, kind: input, shape index: {}]
  %s1 = inlined_call_operand.hbm [shape: f32[50,128], index: 1, kind: input, shape index: {}]
  %s2 = inlined_call_operand.hbm [shape: f32[8,128], index: 2, kind: input, shape index: {}]
  %s3 = inlined_call_operand.hbm [shape: f32[16,128], index: 3, kind: output, shape index: {}]
  %s4 = sld [smem:[#allocation0]]
  $region33: #{tpu_custom_call.1} parent=0
    _
  %s6 = ssub.s32 1, %s4
  %s7 = scalar_select 0, %s6, %s4
  %9 = dma.hbm_to_smem %s0, 16, [#allocation3], [#allocation2]
  %10 = dma.done [#allocation2], 16
  %11 = sfence
  $region1: #{tpu_custom_call.1} parent=0
    #allocation4 [shape = 'u8[28672]{0}', space=vmem, size = 0x7000, scoped, tag = 'input window, operand 1, single buffered']
    #allocation5 [shape = 's32[1]{0}', space=sflag, size = 0x4, scoped, tag = 'scoped memory for tpu_custom_call.1']
    #allocation6 [shape = 's32[1]{0}', space=sflag, size = 0x4, scoped, tag = 'scoped memory for tpu_custom_call.1']
    #allocation7 [shape = 'u8[4096]{0}', space=vmem, size = 0x1000, scoped, tag = 'input window, operand 2, single buffered']
    #allocation8 [shape = 's32[1]{0}', space=sflag, size = 0x4, scoped, tag = 'scoped memory for tpu_custom_call.1']
    #allocation9 [shape = 'u8[8192]{0}', space=vmem, size = 0x2000, scoped, tag = 'output window, operand 0, single buffered']
    %12 = vsyncpa [#allocation5], 0
    %13 = vsyncpa [#allocation8], 0
    %14 = vsyncpa [#allocation6], 0
    // Predicated region
    $region2: #{tpu_custom_call.1} parent=1 // pred_check
      _
    $region3: #{tpu_custom_call.1} parent=1 // pred_check_branch
      %16 = sbr.rel (0) target = $region5
    $region4: #{tpu_custom_call.1} parent=1 // pred_region
      %s18 = ssub.s32 896, 896
      %19 = vsyncadd [#allocation5], %s18
      %s20 = sshll.u32 [#allocation4], 4
      %s21 = int_to_ptr.vmem [resolvable:$true] %s20
      %26 = dma.hbm_to_vmem [thread:$0]  %s1, 896, %s21, [#allocation5], 128, 128, 8
    $region5: #{tpu_custom_call.1} parent=1 // pred_fallthru
      _
    // Predicated region
    $region6: #{tpu_custom_call.1} parent=1 // pred_check
      _
    $region7: #{tpu_custom_call.1} parent=1 // pred_check_branch
      %28 = sbr.rel (0) target = $region9
    $region8: #{tpu_custom_call.1} parent=1 // pred_region
      %s30 = ssub.s32 128, 128
      %31 = vsyncadd [#allocation8], %s30
      %s33 = sshll.u32 [#allocation7], 4
      %s34 = int_to_ptr.vmem [resolvable:$true] %s33
      %36 = dma.hbm_to_vmem [thread:$0]  %s2, 128, %s34, [#allocation8]
    $region9: #{tpu_custom_call.1} parent=1 // pred_fallthru
      _
    // Predicated region
    $region10: #{tpu_custom_call.1} parent=1 // pred_check
      _
    $region11: #{tpu_custom_call.1} parent=1 // pred_check_branch
      %38 = sbr.rel (0) target = $region13
    $region12: #{tpu_custom_call.1} parent=1 // pred_region
      %39 = dma.done [#allocation5], 896
    $region13: #{tpu_custom_call.1} parent=1 // pred_fallthru
      _
    // Predicated region
    $region14: #{tpu_custom_call.1} parent=1 // pred_check
      _
    $region15: #{tpu_custom_call.1} parent=1 // pred_check_branch
      %41 = sbr.rel (0) target = $region17
    $region16: #{tpu_custom_call.1} parent=1 // pred_region
      %42 = dma.done [#allocation8], 128
    $region17: #{tpu_custom_call.1} parent=1 // pred_fallthru
      _
    %s43 = smul.u32 0, 16
    loop: start=0, step=1, limit=2
    $region18: #{tpu_custom_call.1} parent=1 // loop_pre_header
      _
    $region19: #{tpu_custom_call.1} parent=1 // loop_header
      %s45 = sphi 0, %s49
      %p46 = scmp.ge.s32.totalorder %s45, 2
    $region20: #{tpu_custom_call.1} parent=1 // loop_header_branch
      %48 = sbr.rel (%p46) target = $region24
    $region21: #{tpu_custom_call.1} parent=1 // loop_body
      %s50 = smul.u32 %s45, 8
      %p51 = scmp.lt.s32.totalorder %s50, 0
      %s52 = ssub.s32 0, %s50
      %s53 = scalar_select %p51, %s52, %s50
      %s54 = sand.u32 %s53, 7
      %s55 = ssub.s32 0, %s54
      %s56 = scalar_select %p51, %s55, %s54
      %s57 = sadd.s32 %s43, %s50
      %s58 = sld [smem:[#allocation3 + %s57]]
      %s59 = scalar_lea.vmem [#allocation4], %s58
      %v60 = vld [vmem:[%s59] sm:$0x1]
      %s61 = sadd.s32 %s57, 1
      %s62 = sld [smem:[#allocation3 + %s61]]
      %s63 = scalar_lea.vmem [#allocation4], %s62
      %v64 = vld [vmem:[%s63] sm:$0x1]
      %s65 = sadd.s32 %s57, 2
      %s66 = sld [smem:[#allocation3 + %s65]]
      %s67 = scalar_lea.vmem [#allocation4], %s66
      %v68 = vld [vmem:[%s67] sm:$0x1]
      %s69 = sadd.s32 %s57, 3
      %s70 = sld [smem:[#allocation3 + %s69]]
      %s71 = scalar_lea.vmem [#allocation4], %s70
      %v72 = vld [vmem:[%s71] sm:$0x1]
      %s73 = sadd.s32 %s57, 4
      %s74 = sld [smem:[#allocation3 + %s73]]
      %s75 = scalar_lea.vmem [#allocation4], %s74
      %v76 = vld [vmem:[%s75] sm:$0x1]
      %s77 = sadd.s32 %s57, 5
      %s78 = sld [smem:[#allocation3 + %s77]]
      %s79 = scalar_lea.vmem [#allocation4], %s78
      %v80 = vld [vmem:[%s79] sm:$0x1]
      %s81 = sadd.s32 %s57, 6
      %s82 = sld [smem:[#allocation3 + %s81]]
      %s83 = scalar_lea.vmem [#allocation4], %s82
      %v84 = vld [vmem:[%s83] sm:$0x1]
      %s85 = sadd.s32 %s57, 7
      %s86 = sld [smem:[#allocation3 + %s85]]
      %s87 = scalar_lea.vmem [#allocation4], %s86
      %v88 = vld [vmem:[%s87] sm:$0x1]
      %v90 = vrot.slane %v64, 7
      %v93 = vrot.slane %v68, 6
      %v96 = vrot.slane %v72, 5
      %v99 = vrot.slane %v76, 4
      %v102 = vrot.slane %v80, 3
      %v105 = vrot.slane %v84, 2
      %v108 = vrot.slane %v88, 1
      %vm110 = vcmask 1040384
      %v111 = vsel %vm110, %v60, %v90
      %vm112 = vcmask 1041408
      %v113 = vsel %vm112, %v111, %v93
      %vm114 = vcmask 1042432
      %v115 = vsel %vm114, %v113, %v96
      %vm116 = vcmask 1043456
      %v117 = vsel %vm116, %v115, %v99
      %vm118 = vcmask 1044480
      %v119 = vsel %vm118, %v117, %v102
      %vm120 = vcmask 1045504
      %v121 = vsel %vm120, %v119, %v105
      %vm122 = vcmask 1046528
      %v123 = vsel %vm122, %v121, %v108
      %s124 = scalar_lea.vmem [#allocation7], %s56
      %v125 = vld [vmem:[%s124] sm:$0xff]
      %v126 = vmul.f32 %v123, 5.656854
      %v127 = vadd.f32 %v125, %v126
      %s128 = scalar_lea.vmem [#allocation9], %s50
      %129 = vst [vmem:[%s128] sm:$0xff] %v127
    $region22: #{tpu_custom_call.1} parent=1 // loop_footer
      %s49 = sadd.s32 1, %s45
    $region23: #{tpu_custom_call.1} parent=1 // loop_footer_branch
      %44 = sbr.rel target = $region19
    $region24: #{tpu_custom_call.1} parent=1 // loop_exit
      _
    // Predicated region
    $region25: #{tpu_custom_call.1} parent=1 // pred_check
      _
    $region26: #{tpu_custom_call.1} parent=1 // pred_check_branch
      %131 = sbr.rel (0) target = $region28
    $region27: #{tpu_custom_call.1} parent=1 // pred_region
      %s133 = ssub.s32 256, 256
      %134 = vsyncadd [#allocation6], %s133
      %s135 = sshll.u32 [#allocation9], 4
      %s136 = int_to_ptr.vmem [resolvable:$true] %s135
      %141 = dma.vmem_to_hbm [thread:$0]  %s136, 256, %s3, [#allocation6], 128, 128, 8
    $region28: #{tpu_custom_call.1} parent=1 // pred_fallthru
      _
    // Predicated region
    $region29: #{tpu_custom_call.1} parent=1 // pred_check
      _
    $region30: #{tpu_custom_call.1} parent=1 // pred_check_branch
      %143 = sbr.rel (0) target = $region32
    $region31: #{tpu_custom_call.1} parent=1 // pred_region
      %144 = dma.done [#allocation6], 256
    $region32: #{tpu_custom_call.1} parent=1 // pred_fallthru
      _
    %145 = vsyncpa [#allocation5], 1
    %146 = vsyncpa [#allocation8], 1
    %147 = vsyncpa [#allocation6], 1

</llo_original>
